<compile_context>
chip_gen: v7x
topology: tpu7x:2x2x1
jax: 0.10.0
libtpu: 0.0.40
codegen_flags: <defaults>
</compile_context>

<pallas_src>
import functools

import jax
import jax.numpy as jnp
from jax.experimental import pallas as pl
from jax.experimental.pallas import tpu as pltpu


def _round_up(x: int, m: int) -> int:
    return ((x + m - 1) // m) * m


def token_rep_kernel(feats_ref, w_ref, b_ref, mask_ref, out_ref):
    """One M-tile of the projection + pad_sequence zeroing.

    feats_ref: (TM, Din_p)   bf16  flattened per-token features
    w_ref:     (Din_p, Dout_p) bf16 projection weight (resident)
    b_ref:     (1, Dout_p)   f32   projection bias (resident)
    mask_ref:  (TM, 1)       f32   1.0 for valid tokens, 0.0 for padding
    out_ref:   (TM, Dout_p)  f32   projected, zeroed past sentence length
    """
    y = jnp.dot(feats_ref[...], w_ref[...],
                preferred_element_type=jnp.float32)        # MXU, f32 acc
    y = y + b_ref[...]                                     # (1, Dout) broadcast
    m = mask_ref[...]                                      # (TM, 1)
    out_ref[...] = jnp.where(m > 0.0, y, 0.0)              # pad_sequence zeroing


def token_rep_forward(token_ids, lengths, embed_table, w, b, *, tm: int = 256):
    """Wrapper emulating TokenRepLayer.forward.

    token_ids:   (B, L) int32  (stand-in for the tokenized sentences)
    lengths:     (B,)   int32
    embed_table: (vocab, Din) f32
    w:           (Din, Dout)  f32
    b:           (Dout,)      f32
    Returns dict with 'embeddings' (B, L, Dout) f32 and 'mask' (B, L) int32.
    """
    B, L = token_ids.shape
    Din = embed_table.shape[1]
    Dout = w.shape[1]

    # Glue: deterministic "word embedding" lookup (emulated BERT states).
    # Cast activations to bf16: full-rate MXU + half the HBM traffic.
    feats = embed_table[token_ids].astype(jnp.bfloat16)          # (B, L, Din)

    # Mask in plain JAX (same semantics as torch.arange(max_len) < lengths).
    # Note: int32 here; the PyTorch module returns int64 (.long()).
    mask = (jnp.arange(L)[None, :] < lengths[:, None]).astype(jnp.int32)

    # Flatten tokens and pad to TPU-friendly sizes.
    M = B * L
    din_p = _round_up(Din, 128)
    dout_p = _round_up(Dout, 128)
    tm_eff = min(_round_up(tm, 16), _round_up(M, 16))            # bf16 sublane pack
    m_p = _round_up(M, tm_eff)

    feats2 = jnp.pad(feats.reshape(M, Din),
                     ((0, m_p - M), (0, din_p - Din)))
    w_p = jnp.pad(w.astype(jnp.bfloat16),
                  ((0, din_p - Din), (0, dout_p - Dout)))
    b_p = jnp.pad(b.astype(jnp.float32), (0, dout_p - Dout)).reshape(1, dout_p)
    mask_col = jnp.pad(mask.reshape(M, 1).astype(jnp.float32),
                       ((0, m_p - M), (0, 0)))

    grid = (m_p // tm_eff,)

    out = pl.pallas_call(
        token_rep_kernel,
        out_shape=jax.ShapeDtypeStruct((m_p, dout_p), jnp.float32),
        grid=grid,
        in_specs=[
            pl.BlockSpec((tm_eff, din_p), lambda i: (i, 0)),     # feats tile
            pl.BlockSpec((din_p, dout_p), lambda i: (0, 0)),     # weight (resident)
            pl.BlockSpec((1, dout_p), lambda i: (0, 0)),         # bias (resident)
            pl.BlockSpec((tm_eff, 1), lambda i: (i, 0)),         # mask column tile
        ],
        out_specs=pl.BlockSpec((tm_eff, dout_p), lambda i: (i, 0)),
        compiler_params=pltpu.CompilerParams(
            dimension_semantics=("parallel",),
        ),
    )(feats2, w_p, b_p, mask_col)

    emb = out[:M, :Dout].reshape(B, L, Dout)
    return {"embeddings": emb, "mask": mask}


if __name__ == "__main__":
    # Small synthetic shapes consistent with the forward.
    B, L = 4, 8          # batch, max sentence length  (M = 32 -> grid of 2)
    VOCAB = 64
    DIN, DOUT = 32, 32   # synthetic "hidden_size" (padded to 128 lanes inside)

    key = jax.random.PRNGKey(0)
    k1, k2, k3, k4 = jax.random.split(key, 4)

    # Deterministic parameter init (stand-in for the pretrained embedder).
    embed_table = jax.random.normal(k1, (VOCAB, DIN), dtype=jnp.float32) * 0.1
    w = jax.random.normal(k2, (DIN, DOUT), dtype=jnp.float32) * 0.1
    b = jax.random.normal(k3, (DOUT,), dtype=jnp.float32) * 0.01

    # Inputs: token ids per sentence + variable sentence lengths.
    token_ids = jax.random.randint(k4, (B, L), 0, VOCAB, dtype=jnp.int32)
    lengths = jnp.array([8, 5, 3, 7], dtype=jnp.int32)

    fwd = jax.jit(functools.partial(token_rep_forward, tm=16))
    out = fwd(token_ids, lengths, embed_table, w, b)
    emb = jax.block_until_ready(out["embeddings"])
    mask = jax.block_until_ready(out["mask"])

    # Reference in plain JAX (bf16 inputs, f32 accumulation, like the kernel).
    feats_f = embed_table[token_ids].astype(jnp.bfloat16).astype(jnp.float32)
    w_f = w.astype(jnp.bfloat16).astype(jnp.float32)
    ref_mask = (jnp.arange(L)[None, :] < lengths[:, None]).astype(jnp.int32)
    ref_emb = jnp.einsum("bld,de->ble", feats_f, w_f) + b[None, None, :]
    ref_emb = ref_emb * ref_mask[..., None].astype(jnp.float32)

    assert emb.shape == (B, L, DOUT) and emb.dtype == jnp.float32
    assert mask.shape == (B, L) and mask.dtype == jnp.int32
    assert jnp.allclose(emb, ref_emb, atol=1e-3, rtol=1e-3), (
        float(jnp.max(jnp.abs(emb - ref_emb))))
    assert jnp.array_equal(mask, ref_mask)

    print("KERNEL_OK")
</pallas_src>

<mosaic_0001>
module attributes {stable_mosaic.version = 11 : i64} {
  func.func @token_rep_kernel(%arg0: i32, %arg1: memref<16x128xbf16, #tpu.memory_space<vmem>>, %arg2: memref<128x128xbf16, #tpu.memory_space<vmem>>, %arg3: memref<1x128xf32, #tpu.memory_space<vmem>>, %arg4: memref<16x1xf32, #tpu.memory_space<vmem>>, %arg5: memref<16x128xf32, #tpu.memory_space<vmem>>) attributes {dimension_semantics = [#tpu.dimension_semantics<parallel>], iteration_bounds = array<i64: 2>, scalar_prefetch = 0 : i64, scratch_operands = 0 : i64, tpu.core_type = #tpu.core_type<tc>, window_params = [{transform_indices = @transform_0, window_bounds = array<i64: 16, 128>}, {pipeline_mode = #tpu.pipeline_mode<synchronous>, transform_indices = @transform_1, window_bounds = array<i64: 128, 128>}, {pipeline_mode = #tpu.pipeline_mode<synchronous>, transform_indices = @transform_2, window_bounds = array<i64: 1, 128>}, {transform_indices = @transform_3, window_bounds = array<i64: 16, 1>}, {transform_indices = @transform_4, window_bounds = array<i64: 16, 128>}]} {
    %c0 = arith.constant 0 : index
    %c0_0 = arith.constant 0 : index
    %0 = vector.load %arg1[%c0, %c0_0] : memref<16x128xbf16, #tpu.memory_space<vmem>>, vector<16x128xbf16>
    %c0_1 = arith.constant 0 : index
    %c0_2 = arith.constant 0 : index
    %1 = vector.load %arg2[%c0_1, %c0_2] : memref<128x128xbf16, #tpu.memory_space<vmem>>, vector<128x128xbf16>
    %cst = arith.constant dense<0.000000e+00> : vector<16x128xf32>
    %2 = tpu.matmul %0, %1, %cst {dimension_numbers = #tpu.dot_dimension_numbers<[1], [0], [0], [1], [0, 0, 1, 1], [], []>} : vector<16x128xbf16>, vector<128x128xbf16>, vector<16x128xf32> -> vector<16x128xf32>
    %c0_3 = arith.constant 0 : index
    %c0_4 = arith.constant 0 : index
    %3 = vector.load %arg3[%c0_3, %c0_4] : memref<1x128xf32, #tpu.memory_space<vmem>>, vector<1x128xf32>
    %4 = vector.broadcast %3 : vector<1x128xf32> to vector<16x128xf32>
    %5 = arith.addf %2, %4 : vector<16x128xf32>
    %c0_5 = arith.constant 0 : index
    %c0_6 = arith.constant 0 : index
    %6 = vector.load %arg4[%c0_5, %c0_6] : memref<16x1xf32, #tpu.memory_space<vmem>>, vector<16x1xf32>
    %cst_7 = arith.constant 0.000000e+00 : f32
    %7 = vector.broadcast %cst_7 : f32 to vector<16x1xf32>
    %8 = arith.cmpf ogt, %6, %7 : vector<16x1xf32>
    %cst_8 = arith.constant 0.000000e+00 : f32
    %9 = vector.shape_cast %8 : vector<16x1xi1> to vector<16x1xi1>
    %10 = vector.broadcast %9 : vector<16x1xi1> to vector<16x128xi1>
    %11 = vector.broadcast %cst_8 : f32 to vector<16x128xf32>
    %12 = arith.select %10, %5, %11 : vector<16x128xi1>, vector<16x128xf32>
    %c0_9 = arith.constant 0 : index
    %c0_10 = arith.constant 0 : index
    %13 = vector.load %arg5[%c0_9, %c0_10] : memref<16x128xf32, #tpu.memory_space<vmem>>, vector<16x128xf32>
    tpu.vector_store %arg5[%c0_9, %c0_10], %12 {strides = array<i32>} : memref<16x128xf32, #tpu.memory_space<vmem>>, vector<16x128xf32>,
    return
  }
  func.func @transform_0(%arg0: i32) -> (i32, i32) {
    %c0_i32 = arith.constant 0 : i32
    %c0_i32_0 = arith.constant 0 : i32
    return %arg0, %c0_i32 : i32, i32
  }
  func.func @transform_1(%arg0: i32) -> (i32, i32) {
    %c0_i32 = arith.constant 0 : i32
    %c0_i32_0 = arith.constant 0 : i32
    %c0_i32_1 = arith.constant 0 : i32
    return %c0_i32, %c0_i32_0 : i32, i32
  }
  func.func @transform_2(%arg0: i32) -> (i32, i32) {
    %c0_i32 = arith.constant 0 : i32
    %c0_i32_0 = arith.constant 0 : i32
    %c0_i32_1 = arith.constant 0 : i32
    return %c0_i32, %c0_i32_0 : i32, i32
  }
  func.func @transform_3(%arg0: i32) -> (i32, i32) {
    %c0_i32 = arith.constant 0 : i32
    %c0_i32_0 = arith.constant 0 : i32
    return %arg0, %c0_i32 : i32, i32
  }
  func.func @transform_4(%arg0: i32) -> (i32, i32) {
    %c0_i32 = arith.constant 0 : i32
    %c0_i32_0 = arith.constant 0 : i32
    return %arg0, %c0_i32 : i32, i32
  }
}

</mosaic_0001>

<llo_original>
// kernel: token_rep_forward.1
$region0: #{token_rep_forward.1}
  #allocation0 [shape = 'u32[]', space=smem, size = 0x4, offset = 0x4, fixed_abs, tag = 'smem constant byte address 0x4 - core index']
  #allocation1 [shape = 'u32[144,128]{1,0:T(1,128)}', space=vmem, size = 0x12000, scoped, tag = 'internal scratch']
  %s0 = inlined_call_operand.vmem [shape: bf16[32,128], index: 0, kind: input, shape index: {}]
  %s1 = inlined_call_operand.vmem [shape: bf16[128,128], index: 1, kind: input, shape index: {}]
  %s2 = inlined_call_operand.vmem [shape: f32[1,128], index: 2, kind: input, shape index: {}]
  %s3 = inlined_call_operand.vmem [shape: f32[32,1], index: 3, kind: input, shape index: {}]
  %s4 = inlined_call_operand.vmem [shape: f32[32,128], index: 4, kind: output, shape index: {}]
  %s5 = sld [smem:[#allocation0]]
  $region49: #{token_rep_forward.1} parent=0
    _
  %s7 = ssub.s32 1, %s5
  %s8 = scalar_select 0, %s7, %s5
  loop: start=0, step=1, limit=4
  $region2: #{token_rep_forward.1} parent=0 // loop_pre_header
    _
  $region3: #{token_rep_forward.1} parent=0 // loop_header
    %s10 = sphi 0, %s14
    %p11 = scmp.ge.s32.totalorder %s10, 4
    %s20 = sphi 0, %s22
    %s23 = sphi 0, %s20
    %s24 = sphi 0, %s23
    %s40 = sphi 0, %s24
    %s44 = sphi 0, %s44
    %s46 = sphi 0, %s44
    %s47 = sphi 0, %s46
    %s61 = sphi 0, %s47
    %s65 = sphi 0, %s65
    %s67 = sphi 0, %s65
    %s68 = sphi 0, %s67
    %s82 = sphi 0, %s68
    %s88 = sphi 0, %s90
    %s91 = sphi 0, %s88
    %s92 = sphi 0, %s91
    %s108 = sphi 0, %s92
    %s114 = sphi 0, %s116
    %s117 = sphi 0, %s114
    %s118 = sphi 0, %s117
    %s134 = sphi 0, %s118
  $region4: #{token_rep_forward.1} parent=0 // loop_header_branch
    %13 = sbr.rel (%p11) target = $region8
  $region5: #{token_rep_forward.1} parent=0 // loop_body
    %s15 = ssub.s32 %s10, 1
    %s16 = ssub.s32 %s10, 2
    %s17 = sadd.s32 %s10, 1
    %s18 = ssub.s32 %s10, %s17
    %p19 = scmp.eq.s32.totalorder %s18, 0
    %s21 = sadd.s32 %s20, 1
    %s22 = scalar_select %p19, %s20, %s21
    %p25 = pneg %p19
    %p26 = scmp.eq.s32.totalorder %s10, 1
    %p27 = por %p25, %p26
    %p28 = scmp.ne.s32.totalorder %s20, %s23
    %p29 = scmp.eq.s32.totalorder %s10, 0
    %p30 = por %p28, %p29
    %p31 = scmp.ne.s32.totalorder %s20, %s23
    %p32 = scmp.eq.s32.totalorder %s15, 1
    %p33 = por %p31, %p32
    %p34 = scmp.ne.s32.totalorder %s23, %s24
    %p35 = scmp.eq.s32.totalorder %s15, 0
    %p36 = por %p34, %p35
    %p37 = scmp.ne.s32.totalorder %s23, %s24
    %p38 = scmp.eq.s32.totalorder %s16, 1
    %p39 = por %p37, %p38
    %p41 = scmp.ne.s32.totalorder %s24, %s40
    %p42 = scmp.eq.s32.totalorder %s16, 0
    %p43 = por %p41, %p42
    %s45 = sadd.s32 %s44, 1
    %p48 = scmp.eq.s32.totalorder %s10, 1
    %p49 = scmp.ne.s32.totalorder %s44, %s46
    %p50 = scmp.eq.s32.totalorder %s10, 0
    %p51 = por %p49, %p50
    %p52 = scmp.ne.s32.totalorder %s44, %s46
    %p53 = scmp.eq.s32.totalorder %s15, 1
    %p54 = por %p52, %p53
    %p55 = scmp.ne.s32.totalorder %s46, %s47
    %p56 = scmp.eq.s32.totalorder %s15, 0
    %p57 = por %p55, %p56
    %p58 = scmp.ne.s32.totalorder %s46, %s47
    %p59 = scmp.eq.s32.totalorder %s16, 1
    %p60 = por %p58, %p59
    %p62 = scmp.ne.s32.totalorder %s47, %s61
    %p63 = scmp.eq.s32.totalorder %s16, 0
    %p64 = por %p62, %p63
    %s66 = sadd.s32 %s65, 1
    %p69 = scmp.eq.s32.totalorder %s10, 1
    %p70 = scmp.ne.s32.totalorder %s65, %s67
    %p71 = scmp.eq.s32.totalorder %s10, 0
    %p72 = por %p70, %p71
    %p73 = scmp.ne.s32.totalorder %s65, %s67
    %p74 = scmp.eq.s32.totalorder %s15, 1
    %p75 = por %p73, %p74
    %p76 = scmp.ne.s32.totalorder %s67, %s68
    %p77 = scmp.eq.s32.totalorder %s15, 0
    %p78 = por %p76, %p77
    %p79 = scmp.ne.s32.totalorder %s67, %s68
    %p80 = scmp.eq.s32.totalorder %s16, 1
    %p81 = por %p79, %p80
    %p83 = scmp.ne.s32.totalorder %s68, %s82
    %p84 = scmp.eq.s32.totalorder %s16, 0
    %p85 = por %p83, %p84
    %s86 = ssub.s32 %s10, %s17
    %p87 = scmp.eq.s32.totalorder %s86, 0
    %s89 = sadd.s32 %s88, 1
    %s90 = scalar_select %p87, %s88, %s89
    %p93 = pneg %p87
    %p94 = scmp.eq.s32.totalorder %s10, 1
    %p95 = por %p93, %p94
    %p96 = scmp.ne.s32.totalorder %s88, %s91
    %p97 = scmp.eq.s32.totalorder %s10, 0
    %p98 = por %p96, %p97
    %p99 = scmp.ne.s32.totalorder %s88, %s91
    %p100 = scmp.eq.s32.totalorder %s15, 1
    %p101 = por %p99, %p100
    %p102 = scmp.ne.s32.totalorder %s91, %s92
    %p103 = scmp.eq.s32.totalorder %s15, 0
    %p104 = por %p102, %p103
    %p105 = scmp.ne.s32.totalorder %s91, %s92
    %p106 = scmp.eq.s32.totalorder %s16, 1
    %p107 = por %p105, %p106
    %p109 = scmp.ne.s32.totalorder %s92, %s108
    %p110 = scmp.eq.s32.totalorder %s16, 0
    %p111 = por %p109, %p110
    %s112 = ssub.s32 %s10, %s17
    %p113 = scmp.eq.s32.totalorder %s112, 0
    %s115 = sadd.s32 %s114, 1
    %s116 = scalar_select %p113, %s114, %s115
    %p119 = pneg %p113
    %p120 = scmp.eq.s32.totalorder %s10, 1
    %p121 = por %p119, %p120
    %p122 = scmp.ne.s32.totalorder %s114, %s117
    %p123 = scmp.eq.s32.totalorder %s10, 0
    %p124 = por %p122, %p123
    %p125 = scmp.ne.s32.totalorder %s114, %s117
    %p126 = scmp.eq.s32.totalorder %s15, 1
    %p127 = por %p125, %p126
    %p128 = scmp.ne.s32.totalorder %s117, %s118
    %p129 = scmp.eq.s32.totalorder %s15, 0
    %p130 = por %p128, %p129
    %p131 = scmp.ne.s32.totalorder %s117, %s118
    %p132 = scmp.eq.s32.totalorder %s16, 1
    %p133 = por %p131, %p132
    %p135 = scmp.ne.s32.totalorder %s118, %s134
    %p136 = scmp.eq.s32.totalorder %s16, 0
    %p137 = por %p135, %p136
    %p138 = scmp.le.s32.totalorder 1, %s10
    %p139 = scmp.lt.s32.totalorder %s10, 3
    %p140 = pnand %p138, %p139
    %p141 = pneg %p140
    // Predicated region
    $region9: #{token_rep_forward.1} parent=5 // pred_check
      _
    $region10: #{token_rep_forward.1} parent=5 // pred_check_branch
      %143 = sbr.rel (%p140) target = $region12
    $region11: #{token_rep_forward.1} parent=5 // pred_region
      %s144 = ssub.s32 %s10, 1
      // Predicated region
      $region13: #{token_rep_forward.1} parent=11 // pred_check
        %p145 = pneg %p57
      $region14: #{token_rep_forward.1} parent=11 // pred_check_branch
        %147 = sbr.rel (%p145) target = $region16
      $region15: #{token_rep_forward.1} parent=11 // pred_region
        _
      $region16: #{token_rep_forward.1} parent=11 // pred_fallthru
        _
      // Predicated region
      $region17: #{token_rep_forward.1} parent=11 // pred_check
        %p148 = pneg %p78
      $region18: #{token_rep_forward.1} parent=11 // pred_check_branch
        %150 = sbr.rel (%p148) target = $region20
      $region19: #{token_rep_forward.1} parent=11 // pred_region
        _
      $region20: #{token_rep_forward.1} parent=11 // pred_fallthru
        _
    $region12: #{token_rep_forward.1} parent=5 // pred_fallthru
      _
    %p151 = scmp.lt.s32.totalorder %s10, 2
    // Predicated region
    $region21: #{token_rep_forward.1} parent=5 // pred_check
      %p152 = pneg %p151
    $region22: #{token_rep_forward.1} parent=5 // pred_check_branch
      %154 = sbr.rel (%p152) target = $region24
    $region23: #{token_rep_forward.1} parent=5 // pred_region
      // Predicated region
      $region25: #{token_rep_forward.1} parent=23 // pred_check
        %p155 = pneg %p30
      $region26: #{token_rep_forward.1} parent=23 // pred_check_branch
        %157 = sbr.rel (%p155) target = $region28
      $region27: #{token_rep_forward.1} parent=23 // pred_region
        %s158 = smul.u32 2, %s10
        %p159 = scmp.lt.s32.totalorder %s158, 3
        %s160 = scalar_select %p159, %s158, 3
        %s161 = smul.addr %s160, 4
        %s162 = scalar_lea.vmem %s0, %s161
        %s163 = smul.u32 2, %s10
      $region28: #{token_rep_forward.1} parent=23 // pred_fallthru
        _
      // Predicated region
      $region29: #{token_rep_forward.1} parent=23 // pred_check
        %p164 = pneg %p98
      $region30: #{token_rep_forward.1} parent=23 // pred_check_branch
        %166 = sbr.rel (%p164) target = $region32
      $region31: #{token_rep_forward.1} parent=23 // pred_region
        %s167 = smul.u32 2, %s10
        %p168 = scmp.lt.s32.totalorder %s167, 3
        %s169 = scalar_select %p168, %s167, 3
        %s170 = smul.addr %s169, 8
        %s171 = scalar_lea.vmem %s3, %s170
        %s172 = smul.u32 2, %s10
      $region32: #{token_rep_forward.1} parent=23 // pred_fallthru
        _
    $region24: #{token_rep_forward.1} parent=5 // pred_fallthru
      _
    %p173 = scmp.le.s32.totalorder 1, %s10
    %p174 = scmp.lt.s32.totalorder %s10, 3
    %p175 = pnand %p173, %p174
    %p176 = pneg %p175
    // Predicated region
    $region33: #{token_rep_forward.1} parent=5 // pred_check
      _
    $region34: #{token_rep_forward.1} parent=5 // pred_check_branch
      %178 = sbr.rel (%p175) target = $region36
    $region35: #{token_rep_forward.1} parent=5 // pred_region
      %s179 = ssub.s32 %s10, 1
      %s180 = smul.u32 2, %s15
      %p181 = scmp.lt.s32.totalorder %s180, 3
      %s182 = scalar_select %p181, %s180, 3
      %s183 = smul.addr %s182, 4
      %s184 = scalar_lea.vmem %s0, %s183
      %p185 = pneg %p36
      %p186 = pneg %p33
      %p187 = pneg %p57
      %p188 = pneg %p54
      %p189 = pneg %p78
      %p190 = pneg %p75
      %s191 = smul.u32 2, %s15
      %p192 = scmp.lt.s32.totalorder %s191, 3
      %s193 = scalar_select %p192, %s191, 3
      %s194 = smul.addr %s193, 8
      %s195 = scalar_lea.vmem %s3, %s194
      %p196 = pneg %p104
      %p197 = pneg %p101
      %p198 = pneg %p130
      %p199 = pneg %p127
      %s200 = smul.u32 2, %s15
      %p201 = scmp.lt.s32.totalorder %s200, 3
      %s202 = scalar_select %p201, %s200, 3
      %s203 = smul.addr %s202, 8
      %s204 = scalar_lea.vmem %s4, %s203
      %s205 = smul.u32 2, %s15
      %p206 = scmp.lt.s32.totalorder %s205, 3
      %s207 = scalar_select %p206, %s205, 3
      %s208 = smul.addr %s207, 4
      %s209 = scalar_lea.vmem %s0, %s208
      %s210 = smul.u32 2, %s15
      %s211 = smul.u32 2, %s15
      %p212 = scmp.lt.s32.totalorder %s211, 3
      %s213 = scalar_select %p212, %s211, 3
      %s214 = smul.addr %s213, 8
      %s215 = scalar_lea.vmem %s3, %s214
      %s216 = smul.u32 2, %s15
      %s217 = smul.u32 2, %s15
      %p218 = scmp.lt.s32.totalorder %s217, 3
      %s219 = scalar_select %p218, %s217, 3
      %s220 = smul.addr %s219, 8
      %s221 = scalar_lea.vmem %s4, %s220
      %s222 = smul.u32 2, %s15
      %v224 = vld [vmem:[%s209] sm:$0xf]
      %v225 = vld [vmem:[%s209 + $0x4] sm:$0xf]
      %v226 = vld [vmem:[%s1] sm:$0xf]
      %v227 = vld [vmem:[%s1 + $0x4] sm:$0xf]
      %v228 = vld [vmem:[%s1 + $0x8] sm:$0xf]
      %v229 = vld [vmem:[%s1 + $0xc] sm:$0xf]
      %v230 = vld [vmem:[%s1 + $0x10] sm:$0xf]
      %v231 = vld [vmem:[%s1 + $0x14] sm:$0xf]
      %v232 = vld [vmem:[%s1 + $0x18] sm:$0xf]
      %v233 = vld [vmem:[%s1 + $0x1c] sm:$0xf]
      %v234 = vld [vmem:[%s1 + $0x20] sm:$0xf]
      %v235 = vld [vmem:[%s1 + $0x24] sm:$0xf]
      %v236 = vld [vmem:[%s1 + $0x28] sm:$0xf]
      %v237 = vld [vmem:[%s1 + $0x2c] sm:$0xf]
      %v238 = vld [vmem:[%s1 + $0x30] sm:$0xf]
      %v239 = vld [vmem:[%s1 + $0x34] sm:$0xf]
      %v240 = vld [vmem:[%s1 + $0x38] sm:$0xf]
      %v241 = vld [vmem:[%s1 + $0x3c] sm:$0xf]
      %v242 = vld [vmem:[%s2] sm:$0x1]
      %v244 = vlaneseq
      %v245 = vshrl.u32 %v244, 7
      %v246 = vsub.s32 0, %v245
      %v247 = vrot.slane %v242, %v246
      %v251 = vunpack.c.l.b16 %v224
      %v252 = vunpack.c.l.b16 %v225
      %v253 = vpack.c.b16 %v252, %v251
      %v271 = vunpack.c.l.b16 %v226
      %v272 = vunpack.c.l.b16 %v227
      %v273 = vunpack.c.l.b16 %v228
      %v274 = vunpack.c.l.b16 %v229
      %v275 = vunpack.c.l.b16 %v230
      %v276 = vunpack.c.l.b16 %v231
      %v277 = vunpack.c.l.b16 %v232
      %v278 = vunpack.c.l.b16 %v233
      %v279 = vunpack.c.l.b16 %v234
      %v280 = vunpack.c.l.b16 %v235
      %v281 = vunpack.c.l.b16 %v236
      %v282 = vunpack.c.l.b16 %v237
      %v283 = vunpack.c.l.b16 %v238
      %v284 = vunpack.c.l.b16 %v239
      %v285 = vunpack.c.l.b16 %v240
      %v286 = vunpack.c.l.b16 %v241
      %v287 = vpack.c.b16 %v272, %v271
      %v288 = vpack.c.b16 %v274, %v273
      %v289 = vpack.c.b16 %v276, %v275
      %v290 = vpack.c.b16 %v278, %v277
      %v291 = vpack.c.b16 %v280, %v279
      %v292 = vpack.c.b16 %v282, %v281
      %v293 = vpack.c.b16 %v284, %v283
      %v294 = vpack.c.b16 %v286, %v285
      %303 = vmatprep.subr.bf16.mxu0 0
      %304 = vmatpush1.bf16.msra.mxu0 %v287
      %305 = vmatprep.subr.bf16.mxu0 0
      %306 = vmatpush1.bf16.msra.mxu0 %v288
      %307 = vmatprep.subr.bf16.mxu0 0
      %308 = vmatpush1.bf16.msra.mxu0 %v289
      %309 = vmatprep.subr.bf16.mxu0 0
      %310 = vmatpush1.bf16.msra.mxu0 %v290
      %311 = vmatprep.subr.bf16.mxu0 0
      %312 = vmatpush1.bf16.msra.mxu0 %v291
      %313 = vmatprep.subr.bf16.mxu0 0
      %314 = vmatpush1.bf16.msra.mxu0 %v292
      %315 = vmatprep.subr.bf16.mxu0 0
      %316 = vmatpush1.bf16.msra.mxu0 %v293
      %317 = vmatprep.subr.bf16.mxu0 0
      %318 = vmatpush1.bf16.msra.mxu0 %v294
      %319 = vmatprep.subr.bf16.mxu0 0
      %320 = vmatpush1.bf16.msra.mxu0 0
      %321 = vmatprep.subr.bf16.mxu0 0
      %322 = vmatpush1.bf16.msra.mxu0 0
      %323 = vmatprep.subr.bf16.mxu0 0
      %324 = vmatpush1.bf16.msra.mxu0 0
      %325 = vmatprep.subr.bf16.mxu0 0
      %326 = vmatpush1.bf16.msra.mxu0 0
      %327 = vmatprep.subr.bf16.mxu0 0
      %328 = vmatpush1.bf16.msra.mxu0 0
      %329 = vmatprep.subr.bf16.mxu0 0
      %330 = vmatpush1.bf16.msra.mxu0 0
      %331 = vmatprep.subr.bf16.mxu0 0
      %332 = vmatpush1.bf16.msra.mxu0 0
      %333 = vmatprep.subr.bf16.mxu0 0
      %334 = vmatpush1.bf16.msra.mxu0 0
      %335 = vmatprep.mubr.bf16.mxu0 0
      %336 = vmatmul.mubr.bf16.gmra.mrb[0].mxu0 %v253
      %v337 = vpop.f32.mrb[0].mxu0
      %v338 = vadd.f32 %v247, %v337
      %v339 = vpop.f32.mrb[0].mxu0
      %v340 = vpop.f32.mrb[0].mxu0
      %v341 = vadd.f32 %v247, %v340
      %v342 = vpop.f32.mrb[0].mxu0
      %343 = vdwg.mxu0
      %v344 = vld [vmem:[%s215] sm:$0xff]
      %v345 = vld [vmem:[%s215 + $0x8] sm:$0xff]
      %vm346 = vcmp.gt.f32.partialorder %v344, 0.0
      %vm347 = vcmp.gt.f32.partialorder %v345, 0.0
      %v348 = vsel %vm346, 1, 0
      %v349 = vsel %vm347, 1, 0
      %350 = vset.pattern.permute.xlu0 0
      %351 = vperm.xlu0 %350, %v348
      %v352 = vpop.permute.xlu0 %351
      %353 = vset.pattern.permute.xlu0 0
      %354 = vperm.xlu0 %353, %v349
      %v355 = vpop.permute.xlu0 %354
      %vm356 = vcmp.eq.s32.totalorder %v352, 1
      %vm357 = vcmp.eq.s32.totalorder %v355, 1
      %v358 = vsel %vm356, %v338, 0.0
      %v359 = vsel %vm357, %v341, 0.0
      %360 = vst [vmem:[%s221] sm:$0xff] %v358
      %361 = vst [vmem:[%s221 + $0x8] sm:$0xff] %v359
      %s362 = smul.u32 2, %s15
      %p363 = scmp.lt.s32.totalorder %s362, 3
      %s364 = scalar_select %p363, %s362, 3
      %s365 = smul.addr %s364, 8
      %s366 = scalar_lea.vmem %s4, %s365
      // Predicated region
      $region37: #{token_rep_forward.1} parent=35 // pred_check
        %p367 = pneg %p127
      $region38: #{token_rep_forward.1} parent=35 // pred_check_branch
        %369 = sbr.rel (%p367) target = $region40
      $region39: #{token_rep_forward.1} parent=35 // pred_region
        %s370 = smul.u32 2, %s15
      $region40: #{token_rep_forward.1} parent=35 // pred_fallthru
        _
    $region36: #{token_rep_forward.1} parent=5 // pred_fallthru
      _
    %p371 = scmp.le.s32.totalorder 2, %s10
    // Predicated region
    $region41: #{token_rep_forward.1} parent=5 // pred_check
      %p372 = pneg %p371
    $region42: #{token_rep_forward.1} parent=5 // pred_check_branch
      %374 = sbr.rel (%p372) target = $region44
    $region43: #{token_rep_forward.1} parent=5 // pred_region
      %s375 = ssub.s32 %s10, 2
      // Predicated region
      $region45: #{token_rep_forward.1} parent=43 // pred_check
        %p376 = pneg %p133
      $region46: #{token_rep_forward.1} parent=43 // pred_check_branch
        %378 = sbr.rel (%p376) target = $region48
      $region47: #{token_rep_forward.1} parent=43 // pred_region
        %s379 = smul.u32 2, %s16
        %p380 = scmp.lt.s32.totalorder %s379, 3
        %s381 = scalar_select %p380, %s379, 3
        %s382 = smul.addr %s381, 8
        %s383 = scalar_lea.vmem %s4, %s382
      $region48: #{token_rep_forward.1} parent=43 // pred_fallthru
        _
    $region44: #{token_rep_forward.1} parent=5 // pred_fallthru
      _
  $region6: #{token_rep_forward.1} parent=0 // loop_footer
    %s14 = sadd.s32 1, %s10
  $region7: #{token_rep_forward.1} parent=0 // loop_footer_branch
    %9 = sbr.rel target = $region3
  $region8: #{token_rep_forward.1} parent=0 // loop_exit
    _

</llo_original>
